<compile_context>
chip_gen: v7x
topology: tpu7x:2x2x1
jax: 0.10.0
libtpu: 0.0.40
codegen_flags: <defaults>
</compile_context>

<pallas_src>
import functools

import numpy as np
import jax
import jax.numpy as jnp
from jax.experimental import pallas as pl
from jax.experimental.pallas import tpu as pltpu


def _boundary_mask(h, w):
    """(3, 3, H*W) validity mask per 3x3 tap (replaces zero padding)."""
    ii, jj = np.meshgrid(np.arange(h), np.arange(w), indexing="ij")
    m = np.zeros((3, 3, h * w), np.float32)
    for kh in range(3):
        for kw in range(3):
            ok = ((ii + kh - 1 >= 0) & (ii + kh - 1 < h) &
                  (jj + kw - 1 >= 0) & (jj + kw - 1 < w))
            m[kh, kw] = ok.reshape(-1).astype(np.float32)
    return m


def _dsconv_kernel(x_ref, wm_ref, wpw_ref, gamma_ref, beta_ref, o_ref,
                   *, n, cin, cout, h, w, eps):
    # x_ref    : (N*Cin, P)        input, batch folded into sublanes, P = H*W
    # wm_ref   : (3, 3, N*Cin, P)  fused (boundary mask * depthwise weight)
    # wpw_ref  : (Cin, Cout, P)    pointwise weights, lane-broadcast
    # gamma_ref: (Cout, P)         BN weight, lane-broadcast
    # beta_ref : (Cout, P)         BN bias, lane-broadcast
    # o_ref    : (N*Cout, P)
    p = h * w
    x = x_ref[...]                                         # full (8,128) tiles

    # --- depthwise 3x3, stride 1, pad 1 --------------------------------------
    # One XLU lane roll + one fused mask*weight VPU MAC per tap; two partial
    # accumulators shorten the dependency chain for the 4-wide VALU.
    acc = [x * wm_ref[1, 1], jnp.zeros_like(x)]
    t = 0
    for kh in range(3):
        for kw in range(3):
            if kh == 1 and kw == 1:
                continue
            d = (kh - 1) * w + (kw - 1)                    # folded-P source offset
            shifted = pltpu.roll(x, shift=(-d) % p, axis=1)
            acc[t & 1] = acc[t & 1] + shifted * wm_ref[kh, kw]
            t += 1
    dw = acc[0] + acc[1]                                   # (N*Cin, P)

    # --- pointwise 1x1: Cin full-tile broadcast MACs per batch image ---------
    # TODO(synk): for real channel counts (Cin/Cout >= 128) switch to a single
    # MXU jnp.dot with f32 accumulation instead of VPU broadcast MACs.
    ys = []
    for b in range(n):
        acc_b = dw[b * cin:(b + 1) * cin, :]               # (Cin, P)
        y_b = acc_b[0:1, :] * wpw_ref[0]                   # (1,P)*(Cout,P)->(Cout,P)
        for ci in range(1, cin):
            y_b = y_b + acc_b[ci:ci + 1, :] * wpw_ref[ci]
        ys.append(y_b)                                     # per-image (Cout, P)

    # --- BatchNorm2d: training-mode batch stats (f32, centered variance) -----
    inv = 1.0 / float(n * p)
    tot = ys[0]
    for b in range(1, n):
        tot = tot + ys[b]
    mean = jnp.sum(tot, axis=1, keepdims=True) * inv       # (Cout, 1)
    vacc = None
    for b in range(n):
        d_b = ys[b] - mean
        sq = jnp.sum(d_b * d_b, axis=1, keepdims=True)
        vacc = sq if vacc is None else vacc + sq
    var = vacc * inv                                       # biased variance
    scale = gamma_ref[...] * jax.lax.rsqrt(var + eps)      # (Cout, P)
    shift = beta_ref[...] - mean * scale                   # (Cout, P)

    # --- scale/shift + ReLU, aligned lane-dense stores ------------------------
    for b in range(n):
        o_ref[b * cout:(b + 1) * cout, :] = jnp.maximum(ys[b] * scale + shift, 0.0)


def dsconv_forward(x_nchw, w_dw, w_pw, gamma, beta, *, eps=1e-5):
    """x_nchw: (N, Cin, H, W); w_dw: (Cin, 1, 3, 3); w_pw: (Cout, Cin, 1, 1)."""
    n, cin, h, w = x_nchw.shape
    cout = w_pw.shape[0]
    p = h * w

    # Glue is pure reshape (no transpose / pad of the activation).
    x2d = x_nchw.reshape(n * cin, p).astype(jnp.float32)

    # Fused per-tap (boundary-mask * depthwise-weight), tiled over the batch so
    # its sublane rows line up with x2d's (row = b*Cin + ci).
    mask = jnp.asarray(_boundary_mask(h, w))                       # (3,3,P) const
    wdw = jnp.transpose(w_dw[:, 0, :, :], (1, 2, 0)).astype(jnp.float32)  # (3,3,Cin)
    wm = wdw[..., None] * mask[:, :, None, :]                      # (3,3,Cin,P)
    wm = jnp.tile(wm, (1, 1, n, 1))                                # (3,3,N*Cin,P)
    # NOTE: mask*weight differs from zero padding only for inf/NaN border input.

    # Lane-dense small parameters (no size-1 trailing dims -> no padded tiles).
    wpw = jnp.transpose(w_pw[:, :, 0, 0], (1, 0)).astype(jnp.float32)     # (Cin,Cout)
    wpw_b = jnp.broadcast_to(wpw[:, :, None], (cin, cout, p))
    gamma_b = jnp.broadcast_to(gamma.astype(jnp.float32)[:, None], (cout, p))
    beta_b = jnp.broadcast_to(beta.astype(jnp.float32)[:, None], (cout, p))

    kernel = functools.partial(_dsconv_kernel, n=n, cin=cin, cout=cout,
                               h=h, w=w, eps=eps)

    def full(shape):
        return pl.BlockSpec(shape, lambda i: (0,) * len(shape))

    out = pl.pallas_call(
        kernel,
        out_shape=jax.ShapeDtypeStruct((n * cout, p), jnp.float32),
        grid=(1,),
        in_specs=[
            full((n * cin, p)),
            full((3, 3, n * cin, p)),
            full((cin, cout, p)),
            full((cout, p)),
            full((cout, p)),
        ],
        out_specs=full((n * cout, p)),
        compiler_params=pltpu.CompilerParams(
            dimension_semantics=("arbitrary",)),
    )(x2d, wm, wpw_b, gamma_b, beta_b)

    # TODO(synk): PyTorch training-mode BatchNorm2d also updates
    # running_mean / running_var; only the forward output is reproduced here.
    return out.reshape(n, cout, h, w)


def _reference(x_nchw, w_dw, w_pw, gamma, beta, eps=1e-5):
    """Plain-JAX reference mirroring the PyTorch forward."""
    n, cin, h, w = x_nchw.shape
    cout = w_pw.shape[0]
    y = jax.lax.conv_general_dilated(
        x_nchw, w_dw, window_strides=(1, 1), padding=((1, 1), (1, 1)),
        dimension_numbers=("NCHW", "OIHW", "NCHW"), feature_group_count=cin)
    y = jax.lax.conv_general_dilated(
        y, w_pw, window_strides=(1, 1), padding="VALID",
        dimension_numbers=("NCHW", "OIHW", "NCHW"))
    mean = jnp.mean(y, axis=(0, 2, 3), keepdims=True)
    var = jnp.mean((y - mean) ** 2, axis=(0, 2, 3), keepdims=True)
    y = (y - mean) * jax.lax.rsqrt(var + eps)
    y = y * gamma.reshape(1, cout, 1, 1) + beta.reshape(1, cout, 1, 1)
    return jnp.maximum(y, 0.0)


if __name__ == "__main__":
    key = jax.random.PRNGKey(0)
    kx, kdw, kpw, kg, kb = jax.random.split(key, 5)

    N, CIN, COUT, H, W = 2, 4, 8, 16, 16
    x = jax.random.normal(kx, (N, CIN, H, W), jnp.float32)
    w_dw = jax.random.normal(kdw, (CIN, 1, 3, 3), jnp.float32) * 0.3   # groups=CIN
    w_pw = jax.random.normal(kpw, (COUT, CIN, 1, 1), jnp.float32) * 0.3
    gamma = 1.0 + 0.1 * jax.random.normal(kg, (COUT,), jnp.float32)
    beta = 0.1 * jax.random.normal(kb, (COUT,), jnp.float32)

    out = jax.block_until_ready(dsconv_forward(x, w_dw, w_pw, gamma, beta))
    ref = jax.block_until_ready(_reference(x, w_dw, w_pw, gamma, beta))

    assert out.shape == (N, COUT, H, W)
    assert jnp.allclose(out, ref, atol=1e-4, rtol=1e-4), "mismatch vs reference"
    print("KERNEL_OK")
</pallas_src>

<mosaic_0001>
module attributes {stable_mosaic.version = 11 : i64} {
  func.func @_dsconv_kernel(%arg0: i32, %arg1: memref<8x256xf32, #tpu.memory_space<vmem>>, %arg2: memref<3x3x8x256xf32, #tpu.memory_space<vmem>>, %arg3: memref<4x8x256xf32, #tpu.memory_space<vmem>>, %arg4: memref<8x256xf32, #tpu.memory_space<vmem>>, %arg5: memref<8x256xf32, #tpu.memory_space<vmem>>, %arg6: memref<16x256xf32, #tpu.memory_space<vmem>>) attributes {dimension_semantics = [#tpu.dimension_semantics<arbitrary>], iteration_bounds = array<i64: 1>, scalar_prefetch = 0 : i64, scratch_operands = 0 : i64, tpu.core_type = #tpu.core_type<tc>, window_params = [{pipeline_mode = #tpu.pipeline_mode<synchronous>, transform_indices = @transform_0, window_bounds = array<i64: 8, 256>}, {pipeline_mode = #tpu.pipeline_mode<synchronous>, transform_indices = @transform_1, window_bounds = array<i64: 3, 3, 8, 256>}, {pipeline_mode = #tpu.pipeline_mode<synchronous>, transform_indices = @transform_2, window_bounds = array<i64: 4, 8, 256>}, {pipeline_mode = #tpu.pipeline_mode<synchronous>, transform_indices = @transform_3, window_bounds = array<i64: 8, 256>}, {pipeline_mode = #tpu.pipeline_mode<synchronous>, transform_indices = @transform_4, window_bounds = array<i64: 8, 256>}, {pipeline_mode = #tpu.pipeline_mode<synchronous>, transform_indices = @transform_5, window_bounds = array<i64: 16, 256>}]} {
    %c0 = arith.constant 0 : index
    %c0_0 = arith.constant 0 : index
    %0 = vector.load %arg1[%c0, %c0_0] : memref<8x256xf32, #tpu.memory_space<vmem>>, vector<8x256xf32>
    %c1 = arith.constant 1 : index
    %c1_1 = arith.constant 1 : index
    %c0_2 = arith.constant 0 : index
    %c0_3 = arith.constant 0 : index
    %1 = vector.load %arg2[%c1, %c1_1, %c0_2, %c0_3] : memref<3x3x8x256xf32, #tpu.memory_space<vmem>>, vector<1x1x8x256xf32>
    %2 = vector.shape_cast %1 : vector<1x1x8x256xf32> to vector<8x256xf32>
    %3 = arith.mulf %0, %2 : vector<8x256xf32>
    %cst = arith.constant 0.000000e+00 : f32
    %4 = vector.broadcast %cst : f32 to vector<8x256xf32>
    %c17_i32 = arith.constant 17 : i32
    %5 = tpu.dynamic_rotate %0 by %c17_i32 dim 1 : vector<8x256xf32>, i32 -> vector<8x256xf32>
    %c0_4 = arith.constant 0 : index
    %c0_5 = arith.constant 0 : index
    %c0_6 = arith.constant 0 : index
    %c0_7 = arith.constant 0 : index
    %6 = vector.load %arg2[%c0_4, %c0_5, %c0_6, %c0_7] : memref<3x3x8x256xf32, #tpu.memory_space<vmem>>, vector<1x1x8x256xf32>
    %7 = vector.shape_cast %6 : vector<1x1x8x256xf32> to vector<8x256xf32>
    %8 = arith.mulf %5, %7 : vector<8x256xf32>
    %9 = arith.addf %3, %8 : vector<8x256xf32>
    %c16_i32 = arith.constant 16 : i32
    %10 = tpu.dynamic_rotate %0 by %c16_i32 dim 1 : vector<8x256xf32>, i32 -> vector<8x256xf32>
    %c0_8 = arith.constant 0 : index
    %c1_9 = arith.constant 1 : index
    %c0_10 = arith.constant 0 : index
    %c0_11 = arith.constant 0 : index
    %11 = vector.load %arg2[%c0_8, %c1_9, %c0_10, %c0_11] : memref<3x3x8x256xf32, #tpu.memory_space<vmem>>, vector<1x1x8x256xf32>
    %12 = vector.shape_cast %11 : vector<1x1x8x256xf32> to vector<8x256xf32>
    %13 = arith.mulf %10, %12 : vector<8x256xf32>
    %14 = arith.addf %4, %13 : vector<8x256xf32>
    %c15_i32 = arith.constant 15 : i32
    %15 = tpu.dynamic_rotate %0 by %c15_i32 dim 1 : vector<8x256xf32>, i32 -> vector<8x256xf32>
    %c0_12 = arith.constant 0 : index
    %c2 = arith.constant 2 : index
    %c0_13 = arith.constant 0 : index
    %c0_14 = arith.constant 0 : index
    %16 = vector.load %arg2[%c0_12, %c2, %c0_13, %c0_14] : memref<3x3x8x256xf32, #tpu.memory_space<vmem>>, vector<1x1x8x256xf32>
    %17 = vector.shape_cast %16 : vector<1x1x8x256xf32> to vector<8x256xf32>
    %18 = arith.mulf %15, %17 : vector<8x256xf32>
    %19 = arith.addf %9, %18 : vector<8x256xf32>
    %c1_i32 = arith.constant 1 : i32
    %20 = tpu.dynamic_rotate %0 by %c1_i32 dim 1 : vector<8x256xf32>, i32 -> vector<8x256xf32>
    %c1_15 = arith.constant 1 : index
    %c0_16 = arith.constant 0 : index
    %c0_17 = arith.constant 0 : index
    %c0_18 = arith.constant 0 : index
    %21 = vector.load %arg2[%c1_15, %c0_16, %c0_17, %c0_18] : memref<3x3x8x256xf32, #tpu.memory_space<vmem>>, vector<1x1x8x256xf32>
    %22 = vector.shape_cast %21 : vector<1x1x8x256xf32> to vector<8x256xf32>
    %23 = arith.mulf %20, %22 : vector<8x256xf32>
    %24 = arith.addf %14, %23 : vector<8x256xf32>
    %c255_i32 = arith.constant 255 : i32
    %25 = tpu.dynamic_rotate %0 by %c255_i32 dim 1 : vector<8x256xf32>, i32 -> vector<8x256xf32>
    %c1_19 = arith.constant 1 : index
    %c2_20 = arith.constant 2 : index
    %c0_21 = arith.constant 0 : index
    %c0_22 = arith.constant 0 : index
    %26 = vector.load %arg2[%c1_19, %c2_20, %c0_21, %c0_22] : memref<3x3x8x256xf32, #tpu.memory_space<vmem>>, vector<1x1x8x256xf32>
    %27 = vector.shape_cast %26 : vector<1x1x8x256xf32> to vector<8x256xf32>
    %28 = arith.mulf %25, %27 : vector<8x256xf32>
    %29 = arith.addf %19, %28 : vector<8x256xf32>
    %c241_i32 = arith.constant 241 : i32
    %30 = tpu.dynamic_rotate %0 by %c241_i32 dim 1 : vector<8x256xf32>, i32 -> vector<8x256xf32>
    %c2_23 = arith.constant 2 : index
    %c0_24 = arith.constant 0 : index
    %c0_25 = arith.constant 0 : index
    %c0_26 = arith.constant 0 : index
    %31 = vector.load %arg2[%c2_23, %c0_24, %c0_25, %c0_26] : memref<3x3x8x256xf32, #tpu.memory_space<vmem>>, vector<1x1x8x256xf32>
    %32 = vector.shape_cast %31 : vector<1x1x8x256xf32> to vector<8x256xf32>
    %33 = arith.mulf %30, %32 : vector<8x256xf32>
    %34 = arith.addf %24, %33 : vector<8x256xf32>
    %c240_i32 = arith.constant 240 : i32
    %35 = tpu.dynamic_rotate %0 by %c240_i32 dim 1 : vector<8x256xf32>, i32 -> vector<8x256xf32>
    %c2_27 = arith.constant 2 : index
    %c1_28 = arith.constant 1 : index
    %c0_29 = arith.constant 0 : index
    %c0_30 = arith.constant 0 : index
    %36 = vector.load %arg2[%c2_27, %c1_28, %c0_29, %c0_30] : memref<3x3x8x256xf32, #tpu.memory_space<vmem>>, vector<1x1x8x256xf32>
    %37 = vector.shape_cast %36 : vector<1x1x8x256xf32> to vector<8x256xf32>
    %38 = arith.mulf %35, %37 : vector<8x256xf32>
    %39 = arith.addf %29, %38 : vector<8x256xf32>
    %c239_i32 = arith.constant 239 : i32
    %40 = tpu.dynamic_rotate %0 by %c239_i32 dim 1 : vector<8x256xf32>, i32 -> vector<8x256xf32>
    %c2_31 = arith.constant 2 : index
    %c2_32 = arith.constant 2 : index
    %c0_33 = arith.constant 0 : index
    %c0_34 = arith.constant 0 : index
    %41 = vector.load %arg2[%c2_31, %c2_32, %c0_33, %c0_34] : memref<3x3x8x256xf32, #tpu.memory_space<vmem>>, vector<1x1x8x256xf32>
    %42 = vector.shape_cast %41 : vector<1x1x8x256xf32> to vector<8x256xf32>
    %43 = arith.mulf %40, %42 : vector<8x256xf32>
    %44 = arith.addf %34, %43 : vector<8x256xf32>
    %45 = arith.addf %39, %44 : vector<8x256xf32>
    %46 = vector.extract_strided_slice %45 {offsets = [0, 0], sizes = [4, 256], strides = [1, 1]} : vector<8x256xf32> to vector<4x256xf32>
    %47 = vector.extract_strided_slice %46 {offsets = [0, 0], sizes = [1, 256], strides = [1, 1]} : vector<4x256xf32> to vector<1x256xf32>
    %c0_35 = arith.constant 0 : index
    %c0_36 = arith.constant 0 : index
    %c0_37 = arith.constant 0 : index
    %48 = vector.load %arg3[%c0_35, %c0_36, %c0_37] : memref<4x8x256xf32, #tpu.memory_space<vmem>>, vector<1x8x256xf32>
    %49 = vector.shape_cast %48 : vector<1x8x256xf32> to vector<8x256xf32>
    %50 = vector.broadcast %47 : vector<1x256xf32> to vector<8x256xf32>
    %51 = arith.mulf %50, %49 : vector<8x256xf32>
    %52 = vector.extract_strided_slice %46 {offsets = [1, 0], sizes = [1, 256], strides = [1, 1]} : vector<4x256xf32> to vector<1x256xf32>
    %c1_38 = arith.constant 1 : index
    %c0_39 = arith.constant 0 : index
    %c0_40 = arith.constant 0 : index
    %53 = vector.load %arg3[%c1_38, %c0_39, %c0_40] : memref<4x8x256xf32, #tpu.memory_space<vmem>>, vector<1x8x256xf32>
    %54 = vector.shape_cast %53 : vector<1x8x256xf32> to vector<8x256xf32>
    %55 = vector.broadcast %52 : vector<1x256xf32> to vector<8x256xf32>
    %56 = arith.mulf %55, %54 : vector<8x256xf32>
    %57 = arith.addf %51, %56 : vector<8x256xf32>
    %58 = vector.extract_strided_slice %46 {offsets = [2, 0], sizes = [1, 256], strides = [1, 1]} : vector<4x256xf32> to vector<1x256xf32>
    %c2_41 = arith.constant 2 : index
    %c0_42 = arith.constant 0 : index
    %c0_43 = arith.constant 0 : index
    %59 = vector.load %arg3[%c2_41, %c0_42, %c0_43] : memref<4x8x256xf32, #tpu.memory_space<vmem>>, vector<1x8x256xf32>
    %60 = vector.shape_cast %59 : vector<1x8x256xf32> to vector<8x256xf32>
    %61 = vector.broadcast %58 : vector<1x256xf32> to vector<8x256xf32>
    %62 = arith.mulf %61, %60 : vector<8x256xf32>
    %63 = arith.addf %57, %62 : vector<8x256xf32>
    %64 = vector.extract_strided_slice %46 {offsets = [3, 0], sizes = [1, 256], strides = [1, 1]} : vector<4x256xf32> to vector<1x256xf32>
    %c3 = arith.constant 3 : index
    %c0_44 = arith.constant 0 : index
    %c0_45 = arith.constant 0 : index
    %65 = vector.load %arg3[%c3, %c0_44, %c0_45] : memref<4x8x256xf32, #tpu.memory_space<vmem>>, vector<1x8x256xf32>
    %66 = vector.shape_cast %65 : vector<1x8x256xf32> to vector<8x256xf32>
    %67 = vector.broadcast %64 : vector<1x256xf32> to vector<8x256xf32>
    %68 = arith.mulf %67, %66 : vector<8x256xf32>
    %69 = arith.addf %63, %68 : vector<8x256xf32>
    %70 = vector.extract_strided_slice %45 {offsets = [4, 0], sizes = [4, 256], strides = [1, 1]} : vector<8x256xf32> to vector<4x256xf32>
    %71 = vector.extract_strided_slice %70 {offsets = [0, 0], sizes = [1, 256], strides = [1, 1]} : vector<4x256xf32> to vector<1x256xf32>
    %c0_46 = arith.constant 0 : index
    %c0_47 = arith.constant 0 : index
    %c0_48 = arith.constant 0 : index
    %72 = vector.load %arg3[%c0_46, %c0_47, %c0_48] : memref<4x8x256xf32, #tpu.memory_space<vmem>>, vector<1x8x256xf32>
    %73 = vector.shape_cast %72 : vector<1x8x256xf32> to vector<8x256xf32>
    %74 = vector.broadcast %71 : vector<1x256xf32> to vector<8x256xf32>
    %75 = arith.mulf %74, %73 : vector<8x256xf32>
    %76 = vector.extract_strided_slice %70 {offsets = [1, 0], sizes = [1, 256], strides = [1, 1]} : vector<4x256xf32> to vector<1x256xf32>
    %c1_49 = arith.constant 1 : index
    %c0_50 = arith.constant 0 : index
    %c0_51 = arith.constant 0 : index
    %77 = vector.load %arg3[%c1_49, %c0_50, %c0_51] : memref<4x8x256xf32, #tpu.memory_space<vmem>>, vector<1x8x256xf32>
    %78 = vector.shape_cast %77 : vector<1x8x256xf32> to vector<8x256xf32>
    %79 = vector.broadcast %76 : vector<1x256xf32> to vector<8x256xf32>
    %80 = arith.mulf %79, %78 : vector<8x256xf32>
    %81 = arith.addf %75, %80 : vector<8x256xf32>
    %82 = vector.extract_strided_slice %70 {offsets = [2, 0], sizes = [1, 256], strides = [1, 1]} : vector<4x256xf32> to vector<1x256xf32>
    %c2_52 = arith.constant 2 : index
    %c0_53 = arith.constant 0 : index
    %c0_54 = arith.constant 0 : index
    %83 = vector.load %arg3[%c2_52, %c0_53, %c0_54] : memref<4x8x256xf32, #tpu.memory_space<vmem>>, vector<1x8x256xf32>
    %84 = vector.shape_cast %83 : vector<1x8x256xf32> to vector<8x256xf32>
    %85 = vector.broadcast %82 : vector<1x256xf32> to vector<8x256xf32>
    %86 = arith.mulf %85, %84 : vector<8x256xf32>
    %87 = arith.addf %81, %86 : vector<8x256xf32>
    %88 = vector.extract_strided_slice %70 {offsets = [3, 0], sizes = [1, 256], strides = [1, 1]} : vector<4x256xf32> to vector<1x256xf32>
    %c3_55 = arith.constant 3 : index
    %c0_56 = arith.constant 0 : index
    %c0_57 = arith.constant 0 : index
    %89 = vector.load %arg3[%c3_55, %c0_56, %c0_57] : memref<4x8x256xf32, #tpu.memory_space<vmem>>, vector<1x8x256xf32>
    %90 = vector.shape_cast %89 : vector<1x8x256xf32> to vector<8x256xf32>
    %91 = vector.broadcast %88 : vector<1x256xf32> to vector<8x256xf32>
    %92 = arith.mulf %91, %90 : vector<8x256xf32>
    %93 = arith.addf %87, %92 : vector<8x256xf32>
    %94 = arith.addf %69, %93 : vector<8x256xf32>
    %cst_58 = arith.constant dense<0.000000e+00> : vector<8xf32>
    %95 = vector.multi_reduction <add>, %94, %cst_58 [1] : vector<8x256xf32> to vector<8xf32>
    %96 = vector.shape_cast %95 : vector<8xf32> to vector<8x1xf32>
    %cst_59 = arith.constant 0.001953125 : f32
    %97 = vector.broadcast %cst_59 : f32 to vector<8x1xf32>
    %98 = arith.mulf %96, %97 : vector<8x1xf32>
    %99 = vector.broadcast %98 : vector<8x1xf32> to vector<8x256xf32>
    %100 = arith.subf %69, %99 : vector<8x256xf32>
    %101 = arith.mulf %100, %100 : vector<8x256xf32>
    %cst_60 = arith.constant dense<0.000000e+00> : vector<8xf32>
    %102 = vector.multi_reduction <add>, %101, %cst_60 [1] : vector<8x256xf32> to vector<8xf32>
    %103 = vector.shape_cast %102 : vector<8xf32> to vector<8x1xf32>
    %104 = vector.broadcast %98 : vector<8x1xf32> to vector<8x256xf32>
    %105 = arith.subf %93, %104 : vector<8x256xf32>
    %106 = arith.mulf %105, %105 : vector<8x256xf32>
    %cst_61 = arith.constant dense<0.000000e+00> : vector<8xf32>
    %107 = vector.multi_reduction <add>, %106, %cst_61 [1] : vector<8x256xf32> to vector<8xf32>
    %108 = vector.shape_cast %107 : vector<8xf32> to vector<8x1xf32>
    %109 = arith.addf %103, %108 : vector<8x1xf32>
    %cst_62 = arith.constant 0.001953125 : f32
    %110 = vector.broadcast %cst_62 : f32 to vector<8x1xf32>
    %111 = arith.mulf %109, %110 : vector<8x1xf32>
    %c0_63 = arith.constant 0 : index
    %c0_64 = arith.constant 0 : index
    %112 = vector.load %arg4[%c0_63, %c0_64] : memref<8x256xf32, #tpu.memory_space<vmem>>, vector<8x256xf32>
    %cst_65 = arith.constant 9.99999974E-6 : f32
    %113 = vector.broadcast %cst_65 : f32 to vector<8x1xf32>
    %114 = arith.addf %111, %113 : vector<8x1xf32>
    %115 = math.rsqrt %114 : vector<8x1xf32>
    %116 = vector.broadcast %115 : vector<8x1xf32> to vector<8x256xf32>
    %117 = arith.mulf %112, %116 : vector<8x256xf32>
    %c0_66 = arith.constant 0 : index
    %c0_67 = arith.constant 0 : index
    %118 = vector.load %arg5[%c0_66, %c0_67] : memref<8x256xf32, #tpu.memory_space<vmem>>, vector<8x256xf32>
    %119 = vector.broadcast %98 : vector<8x1xf32> to vector<8x256xf32>
    %120 = arith.mulf %119, %117 : vector<8x256xf32>
    %121 = arith.subf %118, %120 : vector<8x256xf32>
    %122 = arith.mulf %69, %117 : vector<8x256xf32>
    %123 = arith.addf %122, %121 : vector<8x256xf32>
    %cst_68 = arith.constant 0.000000e+00 : f32
    %124 = vector.broadcast %cst_68 : f32 to vector<8x256xf32>
    %125 = arith.maximumf %123, %124 : vector<8x256xf32>
    %c0_69 = arith.constant 0 : index
    %c0_70 = arith.constant 0 : index
    %126 = vector.load %arg6[%c0_69, %c0_70] : memref<16x256xf32, #tpu.memory_space<vmem>>, vector<8x256xf32>
    tpu.vector_store %arg6[%c0_69, %c0_70], %125 {strides = array<i32>} : memref<16x256xf32, #tpu.memory_space<vmem>>, vector<8x256xf32>,
    %127 = arith.mulf %93, %117 : vector<8x256xf32>
    %128 = arith.addf %127, %121 : vector<8x256xf32>
    %cst_71 = arith.constant 0.000000e+00 : f32
    %129 = vector.broadcast %cst_71 : f32 to vector<8x256xf32>
    %130 = arith.maximumf %128, %129 : vector<8x256xf32>
    %c8 = arith.constant 8 : index
    %c0_72 = arith.constant 0 : index
    %131 = vector.load %arg6[%c8, %c0_72] : memref<16x256xf32, #tpu.memory_space<vmem>>, vector<8x256xf32>
    tpu.vector_store %arg6[%c8, %c0_72], %130 {strides = array<i32>} : memref<16x256xf32, #tpu.memory_space<vmem>>, vector<8x256xf32>,
    return
  }
  func.func @transform_0(%arg0: i32) -> (i32, i32) {
    %c0_i32 = arith.constant 0 : i32
    %c0_i32_0 = arith.constant 0 : i32
    %c0_i32_1 = arith.constant 0 : i32
    return %c0_i32, %c0_i32_0 : i32, i32
  }
  func.func @transform_1(%arg0: i32) -> (i32, i32, i32, i32) {
    %c0_i32 = arith.constant 0 : i32
    %c0_i32_0 = arith.constant 0 : i32
    %c0_i32_1 = arith.constant 0 : i32
    %c0_i32_2 = arith.constant 0 : i32
    %c0_i32_3 = arith.constant 0 : i32
    return %c0_i32, %c0_i32_0, %c0_i32_1, %c0_i32_2 : i32, i32, i32, i32
  }
  func.func @transform_2(%arg0: i32) -> (i32, i32, i32) {
    %c0_i32 = arith.constant 0 : i32
    %c0_i32_0 = arith.constant 0 : i32
    %c0_i32_1 = arith.constant 0 : i32
    %c0_i32_2 = arith.constant 0 : i32
    return %c0_i32, %c0_i32_0, %c0_i32_1 : i32, i32, i32
  }
  func.func @transform_3(%arg0: i32) -> (i32, i32) {
    %c0_i32 = arith.constant 0 : i32
    %c0_i32_0 = arith.constant 0 : i32
    %c0_i32_1 = arith.constant 0 : i32
    return %c0_i32, %c0_i32_0 : i32, i32
  }
  func.func @transform_4(%arg0: i32) -> (i32, i32) {
    %c0_i32 = arith.constant 0 : i32
    %c0_i32_0 = arith.constant 0 : i32
    %c0_i32_1 = arith.constant 0 : i32
    return %c0_i32, %c0_i32_0 : i32, i32
  }
  func.func @transform_5(%arg0: i32) -> (i32, i32) {
    %c0_i32 = arith.constant 0 : i32
    %c0_i32_0 = arith.constant 0 : i32
    %c0_i32_1 = arith.constant 0 : i32
    return %c0_i32, %c0_i32_0 : i32, i32
  }
}

</mosaic_0001>

<llo_original>
// kernel: tpu_custom_call.1
$region0: #{tpu_custom_call.1}
  #allocation0 [shape = 'u32[]', space=smem, size = 0x4, offset = 0x4, fixed_abs, tag = 'smem constant byte address 0x4 - core index']
  #allocation1 [shape = 'u32[144,128]{1,0:T(1,128)}', space=vmem, size = 0x12000, scoped, tag = 'internal scratch']
  %s0 = inlined_call_operand.hbm [shape: f32[8,256], index: 0, kind: input, shape index: {}]
  %s1 = inlined_call_operand.hbm [shape: f32[3,3,8,256], index: 1, kind: input, shape index: {}]
  %s2 = inlined_call_operand.hbm [shape: f32[4,8,256], index: 2, kind: input, shape index: {}]
  %s3 = inlined_call_operand.hbm [shape: f32[8,256], index: 3, kind: input, shape index: {}]
  %s4 = inlined_call_operand.hbm [shape: f32[8,256], index: 4, kind: input, shape index: {}]
  %s5 = inlined_call_operand.hbm [shape: f32[16,256], index: 5, kind: output, shape index: {}]
  %s6 = sld [smem:[#allocation0]]
  $region50: #{tpu_custom_call.1} parent=0
    _
  %s8 = ssub.s32 1, %s6
  %s9 = scalar_select 0, %s8, %s6
  $region1: #{tpu_custom_call.1} parent=0
    #allocation2 [shape = 'u8[8192]{0}', space=vmem, size = 0x2000, scoped, tag = 'input window, operand 0, single buffered']
    #allocation3 [shape = 's32[1]{0}', space=sflag, size = 0x4, scoped, tag = 'scoped memory for tpu_custom_call.1']
    #allocation4 [shape = 's32[1]{0}', space=sflag, size = 0x4, scoped, tag = 'scoped memory for tpu_custom_call.1']
    #allocation5 [shape = 'u8[73728]{0}', space=vmem, size = 0x12000, scoped, tag = 'input window, operand 1, single buffered']
    #allocation6 [shape = 's32[1]{0}', space=sflag, size = 0x4, scoped, tag = 'scoped memory for tpu_custom_call.1']
    #allocation7 [shape = 'u8[32768]{0}', space=vmem, size = 0x8000, scoped, tag = 'input window, operand 2, single buffered']
    #allocation8 [shape = 'u8[8192]{0}', space=vmem, size = 0x2000, scoped, tag = 'input window, operand 3, single buffered']
    #allocation9 [shape = 's32[1]{0}', space=sflag, size = 0x4, scoped, tag = 'scoped memory for tpu_custom_call.1']
    #allocation10 [shape = 'u8[8192]{0}', space=vmem, size = 0x2000, scoped, tag = 'input window, operand 4, single buffered']
    #allocation11 [shape = 'u8[16384]{0}', space=vmem, size = 0x4000, scoped, tag = 'output window, operand 0, single buffered']
    %10 = vsyncpa [#allocation3], 0
    %11 = vsyncpa [#allocation6], 0
    %12 = vsyncpa [#allocation9], 0
    %13 = vsyncpa [#allocation4], 0
    // Predicated region
    $region2: #{tpu_custom_call.1} parent=1 // pred_check
      _
    $region3: #{tpu_custom_call.1} parent=1 // pred_check_branch
      %15 = sbr.rel (0) target = $region5
    $region4: #{tpu_custom_call.1} parent=1 // pred_region
      %s17 = ssub.s32 256, 256
      %18 = vsyncadd [#allocation3], %s17
      %s20 = sshll.u32 [#allocation2], 4
      %s21 = int_to_ptr.vmem [resolvable:$true] %s20
      %23 = dma.hbm_to_vmem [thread:$0]  %s0, 256, %s21, [#allocation3]
    $region5: #{tpu_custom_call.1} parent=1 // pred_fallthru
      _
    // Predicated region
    $region6: #{tpu_custom_call.1} parent=1 // pred_check
      _
    $region7: #{tpu_custom_call.1} parent=1 // pred_check_branch
      %25 = sbr.rel (0) target = $region9
    $region8: #{tpu_custom_call.1} parent=1 // pred_region
      %s27 = ssub.s32 2304, 2304
      %28 = vsyncadd [#allocation6], %s27
      %s29 = sshll.u32 [#allocation5], 4
      %s30 = int_to_ptr.vmem [resolvable:$true] %s29
      %35 = dma.hbm_to_vmem [thread:$0]  %s1, 2304, %s30, [#allocation6], 256, 256, 16
    $region9: #{tpu_custom_call.1} parent=1 // pred_fallthru
      _
    // Predicated region
    $region10: #{tpu_custom_call.1} parent=1 // pred_check
      _
    $region11: #{tpu_custom_call.1} parent=1 // pred_check_branch
      %37 = sbr.rel (0) target = $region13
    $region12: #{tpu_custom_call.1} parent=1 // pred_region
      %s39 = ssub.s32 1024, 1024
      %40 = vsyncadd [#allocation6], %s39
      %s41 = sshll.u32 [#allocation7], 4
      %s42 = int_to_ptr.vmem [resolvable:$true] %s41
      %47 = dma.hbm_to_vmem [thread:$0]  %s2, 1024, %s42, [#allocation6], 256, 256, 16
    $region13: #{tpu_custom_call.1} parent=1 // pred_fallthru
      _
    // Predicated region
    $region14: #{tpu_custom_call.1} parent=1 // pred_check
      _
    $region15: #{tpu_custom_call.1} parent=1 // pred_check_branch
      %49 = sbr.rel (0) target = $region17
    $region16: #{tpu_custom_call.1} parent=1 // pred_region
      %s51 = ssub.s32 256, 256
      %52 = vsyncadd [#allocation9], %s51
      %s54 = sshll.u32 [#allocation8], 4
      %s55 = int_to_ptr.vmem [resolvable:$true] %s54
      %57 = dma.hbm_to_vmem [thread:$0]  %s3, 256, %s55, [#allocation9]
    $region17: #{tpu_custom_call.1} parent=1 // pred_fallthru
      _
    // Predicated region
    $region18: #{tpu_custom_call.1} parent=1 // pred_check
      _
    $region19: #{tpu_custom_call.1} parent=1 // pred_check_branch
      %59 = sbr.rel (0) target = $region21
    $region20: #{tpu_custom_call.1} parent=1 // pred_region
      %s61 = ssub.s32 256, 256
      %62 = vsyncadd [#allocation9], %s61
      %s64 = sshll.u32 [#allocation10], 4
      %s65 = int_to_ptr.vmem [resolvable:$true] %s64
      %67 = dma.hbm_to_vmem [thread:$0]  %s4, 256, %s65, [#allocation9]
    $region21: #{tpu_custom_call.1} parent=1 // pred_fallthru
      _
    // Predicated region
    $region22: #{tpu_custom_call.1} parent=1 // pred_check
      _
    $region23: #{tpu_custom_call.1} parent=1 // pred_check_branch
      %69 = sbr.rel (0) target = $region25
    $region24: #{tpu_custom_call.1} parent=1 // pred_region
      %70 = dma.done [#allocation3], 256
    $region25: #{tpu_custom_call.1} parent=1 // pred_fallthru
      _
    // Predicated region
    $region26: #{tpu_custom_call.1} parent=1 // pred_check
      _
    $region27: #{tpu_custom_call.1} parent=1 // pred_check_branch
      %72 = sbr.rel (0) target = $region29
    $region28: #{tpu_custom_call.1} parent=1 // pred_region
      %73 = dma.done [#allocation6], 2304
    $region29: #{tpu_custom_call.1} parent=1 // pred_fallthru
      _
    // Predicated region
    $region30: #{tpu_custom_call.1} parent=1 // pred_check
      _
    $region31: #{tpu_custom_call.1} parent=1 // pred_check_branch
      %75 = sbr.rel (0) target = $region33
    $region32: #{tpu_custom_call.1} parent=1 // pred_region
      %76 = dma.done [#allocation6], 1024
    $region33: #{tpu_custom_call.1} parent=1 // pred_fallthru
      _
    // Predicated region
    $region34: #{tpu_custom_call.1} parent=1 // pred_check
      _
    $region35: #{tpu_custom_call.1} parent=1 // pred_check_branch
      %78 = sbr.rel (0) target = $region37
    $region36: #{tpu_custom_call.1} parent=1 // pred_region
      %79 = dma.done [#allocation9], 256
    $region37: #{tpu_custom_call.1} parent=1 // pred_fallthru
      _
    // Predicated region
    $region38: #{tpu_custom_call.1} parent=1 // pred_check
      _
    $region39: #{tpu_custom_call.1} parent=1 // pred_check_branch
      %81 = sbr.rel (0) target = $region41
    $region40: #{tpu_custom_call.1} parent=1 // pred_region
      %82 = dma.done [#allocation9], 256
    $region41: #{tpu_custom_call.1} parent=1 // pred_fallthru
      _
    %v83 = vld [vmem:[#allocation2] sm:$0xff]
    %v84 = vld [vmem:[#allocation2 + $0x8] sm:$0xff]
    %s85 = scalar_lea.vmem [#allocation5], 64
    %v86 = vld [vmem:[%s85] sm:$0xff]
    %v87 = vld [vmem:[%s85 + $0x8] sm:$0xff]
    %v88 = vmul.f32 %v83, %v86
    %v89 = vmul.f32 %v84, %v87
    %90 = vrot.lane.b32.xlu0 %v83, 17
    %v91 = vpop.permute.xlu0 %90
    %92 = vrot.lane.b32.xlu0 %v84, 17
    %v93 = vpop.permute.xlu0 %92
    %v94 = vlaneseq
    %v95 = vand.u32 %v94, 127
    %vm96 = vcmp.lt.s32.totalorder %v95, 17
    %v97 = vsel %vm96, %v91, %v93
    %v98 = vsel %vm96, %v93, %v91
    %v99 = vld [vmem:[#allocation5] sm:$0xff]
    %v100 = vld [vmem:[#allocation5 + $0x8] sm:$0xff]
    %v101 = vmul.f32 %v98, %v99
    %v102 = vmul.f32 %v97, %v100
    %v103 = vadd.f32 %v88, %v101
    %v104 = vadd.f32 %v89, %v102
    %105 = vrot.lane.b32.xlu0 %v83, 16
    %v106 = vpop.permute.xlu0 %105
    %107 = vrot.lane.b32.xlu0 %v84, 16
    %v108 = vpop.permute.xlu0 %107
    %vm109 = vcmp.lt.s32.totalorder %v95, 16
    %v110 = vsel %vm109, %v106, %v108
    %v111 = vsel %vm109, %v108, %v106
    %s112 = scalar_lea.vmem [#allocation5], 16
    %v113 = vld [vmem:[%s112] sm:$0xff]
    %v114 = vld [vmem:[%s112 + $0x8] sm:$0xff]
    %v115 = vmul.f32 %v111, %v113
    %v116 = vmul.f32 %v110, %v114
    %v117 = vadd.f32 %v115, 0.0
    %v118 = vadd.f32 %v116, 0.0
    %119 = vrot.lane.b32.xlu0 %v83, 15
    %v120 = vpop.permute.xlu0 %119
    %121 = vrot.lane.b32.xlu0 %v84, 15
    %v122 = vpop.permute.xlu0 %121
    %vm123 = vcmp.lt.s32.totalorder %v95, 15
    %v124 = vsel %vm123, %v120, %v122
    %v125 = vsel %vm123, %v122, %v120
    %s126 = scalar_lea.vmem [#allocation5], 32
    %v127 = vld [vmem:[%s126] sm:$0xff]
    %v128 = vld [vmem:[%s126 + $0x8] sm:$0xff]
    %v129 = vmul.f32 %v125, %v127
    %v130 = vmul.f32 %v124, %v128
    %v131 = vadd.f32 %v103, %v129
    %v132 = vadd.f32 %v104, %v130
    %133 = vrot.lane.b32.xlu0 %v83, 1
    %v134 = vpop.permute.xlu0 %133
    %135 = vrot.lane.b32.xlu0 %v84, 1
    %v136 = vpop.permute.xlu0 %135
    %vm137 = vcmp.lt.s32.totalorder %v95, 1
    %v138 = vsel %vm137, %v134, %v136
    %v139 = vsel %vm137, %v136, %v134
    %s140 = scalar_lea.vmem [#allocation5], 48
    %v141 = vld [vmem:[%s140] sm:$0xff]
    %v142 = vld [vmem:[%s140 + $0x8] sm:$0xff]
    %v143 = vmul.f32 %v139, %v141
    %v144 = vmul.f32 %v138, %v142
    %v145 = vadd.f32 %v117, %v143
    %v146 = vadd.f32 %v118, %v144
    %147 = vrot.lane.b32.xlu0 %v83, 127
    %v148 = vpop.permute.xlu0 %147
    %149 = vrot.lane.b32.xlu0 %v84, 127
    %v150 = vpop.permute.xlu0 %149
    %vm151 = vcmp.lt.s32.totalorder %v95, 127
    %v152 = vsel %vm151, %v148, %v150
    %v153 = vsel %vm151, %v150, %v148
    %s154 = scalar_lea.vmem [#allocation5], 80
    %v155 = vld [vmem:[%s154] sm:$0xff]
    %v156 = vld [vmem:[%s154 + $0x8] sm:$0xff]
    %v157 = vmul.f32 %v152, %v155
    %v158 = vmul.f32 %v153, %v156
    %v159 = vadd.f32 %v131, %v157
    %v160 = vadd.f32 %v132, %v158
    %161 = vrot.lane.b32.xlu0 %v83, 113
    %v162 = vpop.permute.xlu0 %161
    %163 = vrot.lane.b32.xlu0 %v84, 113
    %v164 = vpop.permute.xlu0 %163
    %vm165 = vcmp.lt.s32.totalorder %v95, 113
    %v166 = vsel %vm165, %v162, %v164
    %v167 = vsel %vm165, %v164, %v162
    %s168 = scalar_lea.vmem [#allocation5], 96
    %v169 = vld [vmem:[%s168] sm:$0xff]
    %v170 = vld [vmem:[%s168 + $0x8] sm:$0xff]
    %v171 = vmul.f32 %v166, %v169
    %v172 = vmul.f32 %v167, %v170
    %v173 = vadd.f32 %v145, %v171
    %v174 = vadd.f32 %v146, %v172
    %175 = vrot.lane.b32.xlu0 %v83, 112
    %v176 = vpop.permute.xlu0 %175
    %177 = vrot.lane.b32.xlu0 %v84, 112
    %v178 = vpop.permute.xlu0 %177
    %vm179 = vcmp.lt.s32.totalorder %v95, 112
    %v180 = vsel %vm179, %v176, %v178
    %v181 = vsel %vm179, %v178, %v176
    %s182 = scalar_lea.vmem [#allocation5], 112
    %v183 = vld [vmem:[%s182] sm:$0xff]
    %v184 = vld [vmem:[%s182 + $0x8] sm:$0xff]
    %v185 = vmul.f32 %v180, %v183
    %v186 = vmul.f32 %v181, %v184
    %v187 = vadd.f32 %v159, %v185
    %v188 = vadd.f32 %v160, %v186
    %189 = vrot.lane.b32.xlu0 %v83, 111
    %v190 = vpop.permute.xlu0 %189
    %191 = vrot.lane.b32.xlu0 %v84, 111
    %v192 = vpop.permute.xlu0 %191
    %vm193 = vcmp.lt.s32.totalorder %v95, 111
    %v194 = vsel %vm193, %v190, %v192
    %v195 = vsel %vm193, %v192, %v190
    %s196 = scalar_lea.vmem [#allocation5], 128
    %v197 = vld [vmem:[%s196] sm:$0xff]
    %v198 = vld [vmem:[%s196 + $0x8] sm:$0xff]
    %v199 = vmul.f32 %v194, %v197
    %v200 = vmul.f32 %v195, %v198
    %v201 = vadd.f32 %v173, %v199
    %v202 = vadd.f32 %v174, %v200
    %v203 = vadd.f32 %v187, %v201
    %v204 = vadd.f32 %v188, %v202
    %v205 = vld [vmem:[#allocation7] sm:$0xff]
    %v206 = vld [vmem:[#allocation7 + $0x8] sm:$0xff]
    %v207 = vlaneseq
    %v208 = vshrl.u32 %v207, 7
    %v209 = vsub.s32 0, %v208
    %v210 = vrot.slane %v203, %v209
    %v211 = vlaneseq
    %v212 = vshrl.u32 %v211, 7
    %v213 = vsub.s32 0, %v212
    %v214 = vrot.slane %v204, %v213
    %v215 = vmul.f32 %v210, %v205
    %v216 = vmul.f32 %v214, %v206
    %s217 = scalar_lea.vmem [#allocation7], 16
    %v218 = vld [vmem:[%s217] sm:$0xff]
    %v219 = vld [vmem:[%s217 + $0x8] sm:$0xff]
    %v220 = vlaneseq
    %v221 = vshrl.u32 %v220, 7
    %v222 = vsub.s32 1, %v221
    %v223 = vrot.slane %v203, %v222
    %v224 = vlaneseq
    %v225 = vshrl.u32 %v224, 7
    %v226 = vsub.s32 1, %v225
    %v227 = vrot.slane %v204, %v226
    %v228 = vmul.f32 %v223, %v218
    %v229 = vmul.f32 %v227, %v219
    %v230 = vadd.f32 %v215, %v228
    %v231 = vadd.f32 %v216, %v229
    %s232 = scalar_lea.vmem [#allocation7], 32
    %v233 = vld [vmem:[%s232] sm:$0xff]
    %v234 = vld [vmem:[%s232 + $0x8] sm:$0xff]
    %v235 = vlaneseq
    %v236 = vshrl.u32 %v235, 7
    %v237 = vsub.s32 2, %v236
    %v238 = vrot.slane %v203, %v237
    %v239 = vlaneseq
    %v240 = vshrl.u32 %v239, 7
    %v241 = vsub.s32 2, %v240
    %v242 = vrot.slane %v204, %v241
    %v243 = vmul.f32 %v238, %v233
    %v244 = vmul.f32 %v242, %v234
    %v245 = vadd.f32 %v230, %v243
    %v246 = vadd.f32 %v231, %v244
    %s247 = scalar_lea.vmem [#allocation7], 48
    %v248 = vld [vmem:[%s247] sm:$0xff]
    %v249 = vld [vmem:[%s247 + $0x8] sm:$0xff]
    %v250 = vlaneseq
    %v251 = vshrl.u32 %v250, 7
    %v252 = vsub.s32 3, %v251
    %v253 = vrot.slane %v203, %v252
    %v254 = vlaneseq
    %v255 = vshrl.u32 %v254, 7
    %v256 = vsub.s32 3, %v255
    %v257 = vrot.slane %v204, %v256
    %v258 = vmul.f32 %v253, %v248
    %v259 = vmul.f32 %v257, %v249
    %v260 = vadd.f32 %v245, %v258
    %v261 = vadd.f32 %v246, %v259
    %v262 = vlaneseq
    %v263 = vshrl.u32 %v262, 7
    %v264 = vsub.s32 4, %v263
    %v265 = vrot.slane %v203, %v264
    %v266 = vlaneseq
    %v267 = vshrl.u32 %v266, 7
    %v268 = vsub.s32 4, %v267
    %v269 = vrot.slane %v204, %v268
    %v270 = vmul.f32 %v265, %v205
    %v271 = vmul.f32 %v269, %v206
    %v272 = vlaneseq
    %v273 = vshrl.u32 %v272, 7
    %v274 = vsub.s32 5, %v273
    %v275 = vrot.slane %v203, %v274
    %v276 = vlaneseq
    %v277 = vshrl.u32 %v276, 7
    %v278 = vsub.s32 5, %v277
    %v279 = vrot.slane %v204, %v278
    %v280 = vmul.f32 %v275, %v218
    %v281 = vmul.f32 %v279, %v219
    %v282 = vadd.f32 %v270, %v280
    %v283 = vadd.f32 %v271, %v281
    %v284 = vlaneseq
    %v285 = vshrl.u32 %v284, 7
    %v286 = vsub.s32 6, %v285
    %v287 = vrot.slane %v203, %v286
    %v288 = vlaneseq
    %v289 = vshrl.u32 %v288, 7
    %v290 = vsub.s32 6, %v289
    %v291 = vrot.slane %v204, %v290
    %v292 = vmul.f32 %v287, %v233
    %v293 = vmul.f32 %v291, %v234
    %v294 = vadd.f32 %v282, %v292
    %v295 = vadd.f32 %v283, %v293
    %v296 = vlaneseq
    %v297 = vshrl.u32 %v296, 7
    %v298 = vsub.s32 7, %v297
    %v299 = vrot.slane %v203, %v298
    %v300 = vlaneseq
    %v301 = vshrl.u32 %v300, 7
    %v302 = vsub.s32 7, %v301
    %v303 = vrot.slane %v204, %v302
    %v304 = vmul.f32 %v299, %v248
    %v305 = vmul.f32 %v303, %v249
    %v306 = vadd.f32 %v294, %v304
    %v307 = vadd.f32 %v295, %v305
    %v308 = vadd.f32 %v260, %v306
    %v309 = vadd.f32 %v261, %v307
    %v310 = vadd.f32 %v308, %v309
    %311 = vadd.xlane.f32.xlu0 %v310
    %v312 = vpop.xlane.xlu0 %311
    %v313 = vmul.f32 %v312, 0.001953125
    %v314 = vsub.f32 %v260, %v313
    %v315 = vsub.f32 %v261, %v313
    %v316 = vmul.f32 %v314, %v314
    %v317 = vmul.f32 %v315, %v315
    %v318 = vadd.f32 %v316, %v317
    %319 = vadd.xlane.f32.xlu0 %v318
    %v320 = vpop.xlane.xlu0 %319
    %v321 = vsub.f32 %v306, %v313
    %v322 = vsub.f32 %v307, %v313
    %v323 = vmul.f32 %v321, %v321
    %v324 = vmul.f32 %v322, %v322
    %v325 = vadd.f32 %v323, %v324
    %326 = vadd.xlane.f32.xlu0 %v325
    %v327 = vpop.xlane.xlu0 %326
    %v328 = vadd.f32 %v320, %v327
    %v329 = vmul.f32 %v328, 0.001953125
    %v330 = vld [vmem:[#allocation8] sm:$0xff]
    %v331 = vld [vmem:[#allocation8 + $0x8] sm:$0xff]
    %v332 = vadd.f32 %v329, 1e-05
    %v333 = vrsqrt.pop %v332
    %v334 = vmul.f32 %v330, %v333
    %v335 = vmul.f32 %v331, %v333
    %v336 = vld [vmem:[#allocation10] sm:$0xff]
    %v337 = vld [vmem:[#allocation10 + $0x8] sm:$0xff]
    %v338 = vmul.f32 %v313, %v334
    %v339 = vmul.f32 %v313, %v335
    %v340 = vsub.f32 %v336, %v338
    %v341 = vsub.f32 %v337, %v339
    %v342 = vmul.f32 %v260, %v334
    %v343 = vmul.f32 %v261, %v335
    %v344 = vadd.f32 %v342, %v340
    %v345 = vadd.f32 %v343, %v341
    %v346 = vmax.f32 %v344, 0.0
    %v347 = vmax.f32 %v345, 0.0
    %348 = vst [vmem:[#allocation11] sm:$0xff] %v346
    %349 = vst [vmem:[#allocation11 + $0x8] sm:$0xff] %v347
    %v350 = vmul.f32 %v306, %v334
    %v351 = vmul.f32 %v307, %v335
    %v352 = vadd.f32 %v350, %v340
    %v353 = vadd.f32 %v351, %v341
    %v354 = vmax.f32 %v352, 0.0
    %v355 = vmax.f32 %v353, 0.0
    %356 = vst [vmem:[#allocation11 + $0x10] sm:$0xff] %v354
    %357 = vst [vmem:[#allocation11 + $0x18] sm:$0xff] %v355
    // Predicated region
    $region42: #{tpu_custom_call.1} parent=1 // pred_check
      _
    $region43: #{tpu_custom_call.1} parent=1 // pred_check_branch
      %359 = sbr.rel (0) target = $region45
    $region44: #{tpu_custom_call.1} parent=1 // pred_region
      %s361 = ssub.s32 512, 512
      %362 = vsyncadd [#allocation4], %s361
      %s363 = sshll.u32 [#allocation11], 4
      %s364 = int_to_ptr.vmem [resolvable:$true] %s363
      %369 = dma.vmem_to_hbm [thread:$0]  %s364, 512, %s5, [#allocation4], 256, 256, 16
    $region45: #{tpu_custom_call.1} parent=1 // pred_fallthru
      _
    // Predicated region
    $region46: #{tpu_custom_call.1} parent=1 // pred_check
      _
    $region47: #{tpu_custom_call.1} parent=1 // pred_check_branch
      %371 = sbr.rel (0) target = $region49
    $region48: #{tpu_custom_call.1} parent=1 // pred_region
      %372 = dma.done [#allocation4], 512
    $region49: #{tpu_custom_call.1} parent=1 // pred_fallthru
      _
    %373 = vsyncpa [#allocation3], 1
    %374 = vsyncpa [#allocation6], 1
    %375 = vsyncpa [#allocation9], 1
    %376 = vsyncpa [#allocation4], 1

</llo_original>
